<compile_context>
chip_gen: v7x
topology: tpu7x:2x2x1
jax: 0.10.0
libtpu: 0.0.40
codegen_flags: <defaults>
</compile_context>

<pallas_src>
import functools

import numpy as np
import jax
import jax.numpy as jnp
from jax import lax
from jax.experimental import pallas as pl
from jax.experimental.pallas import tpu as pltpu

COULOMB_K = 332.06371  # kcal/mol * Angstrom / e^2

TILE_E = 512   # edge tile width (lane axis)
LANE = 128     # TPU lane width (output B padding)


# --------------------------------------------------------------------------
# Pallas kernel: per-edge Coulomb + LJ energy, MXU-dot segment-sum per system.
# --------------------------------------------------------------------------
def site_energy_kernel(feat_ref, onehot_ref, out_ref, acc_ref):
    # feat_ref   : (16, TILE_E) packed rows:
    #              0:3 pos_i xyz, 3:6 pos_j xyz, 6 q_i, 7 q_j,
    #              8 sigma_i, 9 sigma_j, 10 sqrt_eps_i, 11 sqrt_eps_j, 12:16 pad
    # onehot_ref : (TILE_E, B_pad) onehot[e, b] = 1 if edge e belongs to system b
    # out_ref    : (1, B_pad)      per-system intermolecular energy (lane-dense)
    # acc_ref    : (1, B_pad) f32  VMEM accumulator across edge tiles
    t = pl.program_id(0)

    @pl.when(t == 0)
    def _():
        acc_ref[...] = jnp.zeros_like(acc_ref)

    feat = feat_ref[...]
    diff = feat[0:3, :] - feat[3:6, :]                        # (3, TILE_E)
    d2 = jnp.sum(diff * diff, axis=0, keepdims=True)          # (1, TILE_E)
    inv_r = jnp.where(d2 > 0.0, lax.rsqrt(d2), 0.0)           # padded lanes -> 0

    qi = feat[6:7, :]
    qj = feat[7:8, :]
    si = feat[8:9, :]
    sj = feat[9:10, :]
    sei = feat[10:11, :]
    sej = feat[11:12, :]

    coulomb = COULOMB_K * qi * qj * inv_r                     # (1, TILE_E)

    eps = sei * sej                       # sqrt(eps_i)*sqrt(eps_j) == sqrt(eps_i*eps_j)
    sr = (0.5 * (si + sj)) * inv_r
    sr2 = sr * sr
    sr6 = sr2 * sr2 * sr2
    lj = 4.0 * eps * (sr6 * sr6 - sr6)                        # (1, TILE_E)

    # padded lanes already contribute exactly 0 (inv_r == 0, params == 0).
    e_edge = coulomb + lj                                     # (1, TILE_E)

    # segment-sum per system as a lane-dense MXU dot: (1,E_t) @ (E_t,B_pad).
    acc_ref[...] += jnp.dot(e_edge, onehot_ref[...],
                            preferred_element_type=jnp.float32)

    @pl.when(t == pl.num_programs(0) - 1)
    def _():
        out_ref[...] = acc_ref[...]


def site_energy_pallas(feat, onehot):
    e_pad = feat.shape[1]
    b_pad = onehot.shape[1]
    n_tiles = e_pad // TILE_E
    return pl.pallas_call(
        site_energy_kernel,
        out_shape=jax.ShapeDtypeStruct((1, b_pad), jnp.float32),
        grid_spec=pltpu.PrefetchScalarGridSpec(
            num_scalar_prefetch=0,
            grid=(n_tiles,),
            in_specs=[
                pl.BlockSpec((16, TILE_E), lambda t: (0, t)),
                pl.BlockSpec((TILE_E, b_pad), lambda t: (t, 0)),
            ],
            out_specs=pl.BlockSpec((1, b_pad), lambda t: (0, 0)),
            scratch_shapes=[pltpu.VMEM((1, b_pad), jnp.float32)],
        ),
        compiler_params=pltpu.CompilerParams(
            dimension_semantics=("arbitrary",)),
    )(feat, onehot)


# --------------------------------------------------------------------------
# Device-side glue (jitted): gathers, packing, one-hot, kernel call.
# --------------------------------------------------------------------------
@functools.partial(jax.jit, static_argnames=("batch_size", "e_pad", "b_pad"))
def humf_forward_device(positions, q, sigma, sqrt_eps, src, dst, edge_sys,
                        batch_size, e_pad, b_pad):
    E = src.shape[0]
    posi = jnp.take(positions, src, axis=0)                   # (E, 3)
    posj = jnp.take(positions, dst, axis=0)                   # (E, 3)
    rows = jnp.stack(
        [posi[:, 0], posi[:, 1], posi[:, 2],
         posj[:, 0], posj[:, 1], posj[:, 2],
         jnp.take(q, src), jnp.take(q, dst),
         jnp.take(sigma, src), jnp.take(sigma, dst),
         jnp.take(sqrt_eps, src), jnp.take(sqrt_eps, dst)],
        axis=0).astype(jnp.float32)                           # (12, E)

    feat = jnp.zeros((16, e_pad), jnp.float32).at[:12, :E].set(rows)
    onehot = jnp.zeros((e_pad, b_pad), jnp.float32).at[
        jnp.arange(E), edge_sys].set(1.0)

    inter = site_energy_pallas(feat, onehot)[0, :batch_size]  # (B,)

    # HumfNoClassifier.forward: zeros(batch_size) + intermolecular_energy
    intra = jnp.zeros((batch_size,), jnp.float32)
    return intra + inter


# --------------------------------------------------------------------------
# Host-side glue: "interaction_sites" submodule + forward entry point.
# --------------------------------------------------------------------------
def build_intermolecular_edges(system_ids, molecule_ids):
    """All (i, j) site pairs in the same system but different molecules (i < j)."""
    n = system_ids.shape[0]
    ii, jj = np.meshgrid(np.arange(n), np.arange(n), indexing="ij")
    mask = (
        (system_ids[ii] == system_ids[jj])
        & (molecule_ids[ii] != molecule_ids[jj])
        & (ii < jj)
    )
    return np.stack([ii[mask], jj[mask]], axis=0)  # (2, E)


def humf_no_classifier_forward(positions, atom_types, molecule_ids, system_ids,
                               param_table, batch_size):
    # --- interaction_sites (synthetic): sites = atoms, params from type table
    site_prm = np.asarray(param_table, np.float32)[np.asarray(atom_types)]  # (N,3)
    edge_index = build_intermolecular_edges(
        np.asarray(system_ids), np.asarray(molecule_ids))                   # (2,E)
    site_batch = np.asarray(system_ids, np.int32)

    src = edge_index[0].astype(np.int32)
    dst = edge_index[1].astype(np.int32)
    E = src.shape[0]
    e_pad = max(TILE_E, ((E + TILE_E - 1) // TILE_E) * TILE_E)
    b_pad = max(LANE, ((batch_size + LANE - 1) // LANE) * LANE)

    q = site_prm[:, 0]
    sigma = site_prm[:, 1]
    sqrt_eps = np.sqrt(site_prm[:, 2]).astype(np.float32)     # host-side sqrt(eps)
    edge_sys = site_batch[src]                                # (E,)

    return humf_forward_device(
        jnp.asarray(positions, jnp.float32),
        jnp.asarray(q), jnp.asarray(sigma), jnp.asarray(sqrt_eps),
        jnp.asarray(src), jnp.asarray(dst), jnp.asarray(edge_sys),
        batch_size=batch_size, e_pad=e_pad, b_pad=b_pad)


# --------------------------------------------------------------------------
# Pure numpy reference for validation.
# --------------------------------------------------------------------------
def reference_forward(positions, atom_types, molecule_ids, system_ids,
                      param_table, B):
    prm = np.asarray(param_table)[np.asarray(atom_types)]
    pos = np.asarray(positions, np.float64)
    edge_index = build_intermolecular_edges(
        np.asarray(system_ids), np.asarray(molecule_ids))
    out = np.zeros((B,), np.float64)
    for i, j in zip(edge_index[0], edge_index[1]):
        r = np.linalg.norm(pos[i] - pos[j])
        qi, si, ei = prm[i]
        qj, sj, ej = prm[j]
        sig = 0.5 * (si + sj)
        eps = np.sqrt(ei * ej)
        sr6 = (sig / r) ** 6
        e = COULOMB_K * qi * qj / r + 4.0 * eps * (sr6 * sr6 - sr6)
        out[system_ids[i]] += e
    return out


if __name__ == "__main__":
    # Small synthetic "batch": B=2 systems, each with 2 molecules of 4 atoms.
    B = 2
    atoms_per_mol = 4
    mols_per_sys = 2
    N = B * mols_per_sys * atoms_per_mol  # 16 atoms / sites

    key = jax.random.PRNGKey(0)
    k_pos, _ = jax.random.split(key)
    # spread molecules apart so distances stay well-conditioned
    base = np.repeat(np.arange(B * mols_per_sys) * 3.0, atoms_per_mol)[:, None]
    positions = (
        np.asarray(jax.random.uniform(k_pos, (N, 3), minval=0.8, maxval=2.0)) + base
    ).astype(np.float32)

    atom_types = np.arange(N) % 4                                   # 4 atom types
    molecule_ids = np.repeat(np.arange(B * mols_per_sys), atoms_per_mol)
    system_ids = np.repeat(np.arange(B), mols_per_sys * atoms_per_mol)

    # deterministic per-type (charge, sigma, epsilon) table
    param_table = np.array(
        [
            [-0.8, 3.15, 0.15],
            [0.4, 1.00, 0.05],
            [0.4, 1.00, 0.05],
            [0.0, 2.50, 0.10],
        ],
        dtype=np.float32,
    )

    out = humf_no_classifier_forward(
        positions, atom_types, molecule_ids, system_ids, param_table, B
    )
    out = jax.block_until_ready(out)

    ref = reference_forward(
        positions, atom_types, molecule_ids, system_ids, param_table, B
    )
    np.testing.assert_allclose(np.asarray(out), ref, rtol=5e-4, atol=1e-3)

    print("KERNEL_OK")
</pallas_src>

<mosaic_0001>
module attributes {stable_mosaic.version = 11 : i64} {
  func.func @site_energy_kernel(%arg0: i32, %arg1: memref<16x512xf32, #tpu.memory_space<vmem>>, %arg2: memref<512x128xf32, #tpu.memory_space<vmem>>, %arg3: memref<1x128xf32, #tpu.memory_space<vmem>>, %arg4: memref<1x128xf32, #tpu.memory_space<vmem>>) attributes {dimension_semantics = [#tpu.dimension_semantics<arbitrary>], iteration_bounds = array<i64: 1>, scalar_prefetch = 0 : i64, scratch_operands = 1 : i64, tpu.core_type = #tpu.core_type<tc>, window_params = [{transform_indices = @transform_0, window_bounds = array<i64: 16, 512>}, {transform_indices = @transform_1, window_bounds = array<i64: 512, 128>}, {pipeline_mode = #tpu.pipeline_mode<synchronous>, transform_indices = @transform_2, window_bounds = array<i64: 1, 128>}]} {
    %c0_i32 = arith.constant 0 : i32
    %0 = arith.cmpi eq, %arg0, %c0_i32 : i32
    %1 = arith.extui %0 : i1 to i32
    %c0_i32_0 = arith.constant 0 : i32
    %2 = arith.cmpi ne, %1, %c0_i32_0 : i32
    scf.if %2 {
      %cst_16 = arith.constant 0.000000e+00 : f32
      %47 = vector.broadcast %cst_16 : f32 to vector<1x128xf32>
      %c0_17 = arith.constant 0 : index
      %c0_18 = arith.constant 0 : index
      %48 = vector.load %arg4[%c0_17, %c0_18] : memref<1x128xf32, #tpu.memory_space<vmem>>, vector<1x128xf32>
      tpu.vector_store %arg4[%c0_17, %c0_18], %47 {strides = array<i32>} : memref<1x128xf32, #tpu.memory_space<vmem>>, vector<1x128xf32>,
    } else {
    }
    %c0 = arith.constant 0 : index
    %c0_1 = arith.constant 0 : index
    %3 = vector.load %arg1[%c0, %c0_1] : memref<16x512xf32, #tpu.memory_space<vmem>>, vector<16x512xf32>
    %4 = vector.extract_strided_slice %3 {offsets = [0, 0], sizes = [3, 512], strides = [1, 1]} : vector<16x512xf32> to vector<3x512xf32>
    %5 = vector.extract_strided_slice %3 {offsets = [3, 0], sizes = [3, 512], strides = [1, 1]} : vector<16x512xf32> to vector<3x512xf32>
    %6 = arith.subf %4, %5 : vector<3x512xf32>
    %7 = arith.mulf %6, %6 : vector<3x512xf32>
    %cst = arith.constant dense<0.000000e+00> : vector<512xf32>
    %8 = vector.multi_reduction <add>, %7, %cst [0] : vector<3x512xf32> to vector<512xf32>
    %9 = vector.shape_cast %8 : vector<512xf32> to vector<1x512xf32>
    %cst_2 = arith.constant 0.000000e+00 : f32
    %10 = vector.broadcast %cst_2 : f32 to vector<1x512xf32>
    %11 = arith.cmpf ogt, %9, %10 : vector<1x512xf32>
    %12 = math.rsqrt %9 : vector<1x512xf32>
    %cst_3 = arith.constant 0.000000e+00 : f32
    %13 = vector.broadcast %cst_3 : f32 to vector<1x512xf32>
    %14 = arith.select %11, %12, %13 : vector<1x512xi1>, vector<1x512xf32>
    %15 = vector.extract_strided_slice %3 {offsets = [6, 0], sizes = [1, 512], strides = [1, 1]} : vector<16x512xf32> to vector<1x512xf32>
    %16 = vector.extract_strided_slice %3 {offsets = [7, 0], sizes = [1, 512], strides = [1, 1]} : vector<16x512xf32> to vector<1x512xf32>
    %17 = vector.extract_strided_slice %3 {offsets = [8, 0], sizes = [1, 512], strides = [1, 1]} : vector<16x512xf32> to vector<1x512xf32>
    %18 = vector.extract_strided_slice %3 {offsets = [9, 0], sizes = [1, 512], strides = [1, 1]} : vector<16x512xf32> to vector<1x512xf32>
    %19 = vector.extract_strided_slice %3 {offsets = [10, 0], sizes = [1, 512], strides = [1, 1]} : vector<16x512xf32> to vector<1x512xf32>
    %20 = vector.extract_strided_slice %3 {offsets = [11, 0], sizes = [1, 512], strides = [1, 1]} : vector<16x512xf32> to vector<1x512xf32>
    %cst_4 = arith.constant 332.063721 : f32
    %21 = vector.broadcast %cst_4 : f32 to vector<1x512xf32>
    %22 = arith.mulf %21, %15 : vector<1x512xf32>
    %23 = arith.mulf %22, %16 : vector<1x512xf32>
    %24 = arith.mulf %23, %14 : vector<1x512xf32>
    %25 = arith.mulf %19, %20 : vector<1x512xf32>
    %26 = arith.addf %17, %18 : vector<1x512xf32>
    %cst_5 = arith.constant 5.000000e-01 : f32
    %27 = vector.broadcast %cst_5 : f32 to vector<1x512xf32>
    %28 = arith.mulf %27, %26 : vector<1x512xf32>
    %29 = arith.mulf %28, %14 : vector<1x512xf32>
    %30 = arith.mulf %29, %29 : vector<1x512xf32>
    %31 = arith.mulf %30, %30 : vector<1x512xf32>
    %32 = arith.mulf %31, %30 : vector<1x512xf32>
    %cst_6 = arith.constant 4.000000e+00 : f32
    %33 = vector.broadcast %cst_6 : f32 to vector<1x512xf32>
    %34 = arith.mulf %33, %25 : vector<1x512xf32>
    %35 = arith.mulf %32, %32 : vector<1x512xf32>
    %36 = arith.subf %35, %32 : vector<1x512xf32>
    %37 = arith.mulf %34, %36 : vector<1x512xf32>
    %38 = arith.addf %24, %37 : vector<1x512xf32>
    %c0_7 = arith.constant 0 : index
    %c0_8 = arith.constant 0 : index
    %39 = vector.load %arg4[%c0_7, %c0_8] : memref<1x128xf32, #tpu.memory_space<vmem>>, vector<1x128xf32>
    %c0_9 = arith.constant 0 : index
    %c0_10 = arith.constant 0 : index
    %40 = vector.load %arg2[%c0_9, %c0_10] : memref<512x128xf32, #tpu.memory_space<vmem>>, vector<512x128xf32>
    %cst_11 = arith.constant dense<0.000000e+00> : vector<1x128xf32>
    %41 = tpu.matmul %38, %40, %cst_11 {dimension_numbers = #tpu.dot_dimension_numbers<[1], [0], [0], [1], [0, 0, 1, 1], [], []>} : vector<1x512xf32>, vector<512x128xf32>, vector<1x128xf32> -> vector<1x128xf32>
    %42 = arith.addf %39, %41 : vector<1x128xf32>
    %c0_12 = arith.constant 0 : index
    %c0_13 = arith.constant 0 : index
    %43 = vector.load %arg4[%c0_12, %c0_13] : memref<1x128xf32, #tpu.memory_space<vmem>>, vector<1x128xf32>
    tpu.vector_store %arg4[%c0_12, %c0_13], %42 {strides = array<i32>} : memref<1x128xf32, #tpu.memory_space<vmem>>, vector<1x128xf32>,
    %c0_i32_14 = arith.constant 0 : i32
    %44 = arith.cmpi eq, %arg0, %c0_i32_14 : i32
    %45 = arith.extui %44 : i1 to i32
    %c0_i32_15 = arith.constant 0 : i32
    %46 = arith.cmpi ne, %45, %c0_i32_15 : i32
    scf.if %46 {
      %c0_16 = arith.constant 0 : index
      %c0_17 = arith.constant 0 : index
      %47 = vector.load %arg4[%c0_16, %c0_17] : memref<1x128xf32, #tpu.memory_space<vmem>>, vector<1x128xf32>
      %c0_18 = arith.constant 0 : index
      %c0_19 = arith.constant 0 : index
      %48 = vector.load %arg3[%c0_18, %c0_19] : memref<1x128xf32, #tpu.memory_space<vmem>>, vector<1x128xf32>
      tpu.vector_store %arg3[%c0_18, %c0_19], %47 {strides = array<i32>} : memref<1x128xf32, #tpu.memory_space<vmem>>, vector<1x128xf32>,
    } else {
    }
    return
  }
  func.func @transform_0(%arg0: i32) -> (i32, i32) {
    %c0_i32 = arith.constant 0 : i32
    %c0_i32_0 = arith.constant 0 : i32
    return %c0_i32, %arg0 : i32, i32
  }
  func.func @transform_1(%arg0: i32) -> (i32, i32) {
    %c0_i32 = arith.constant 0 : i32
    %c0_i32_0 = arith.constant 0 : i32
    return %arg0, %c0_i32 : i32, i32
  }
  func.func @transform_2(%arg0: i32) -> (i32, i32) {
    %c0_i32 = arith.constant 0 : i32
    %c0_i32_0 = arith.constant 0 : i32
    %c0_i32_1 = arith.constant 0 : i32
    return %c0_i32, %c0_i32_0 : i32, i32
  }
}

</mosaic_0001>

<llo_original>
// kernel: humf_forward_device.1
$region0: #{humf_forward_device.1}
  #allocation0 [shape = 'u32[]', space=smem, size = 0x4, offset = 0x4, fixed_abs, tag = 'smem constant byte address 0x4 - core index']
  #allocation1 [shape = 'u32[144,128]{1,0:T(1,128)}', space=vmem, size = 0x12000, scoped, tag = 'internal scratch']
  #allocation2 [shape = 'f32[1,128]{1,0:T(1,128)}', space=vmem, size = 0x200, scoped, tag = 'scratch operand']
  %s0 = inlined_call_operand.vmem [shape: f32[16,512], index: 0, kind: input, shape index: {}]
  %s1 = inlined_call_operand.vmem [shape: f32[512,128], index: 1, kind: input, shape index: {}]
  %s2 = inlined_call_operand.vmem [shape: f32[1,128], index: 2, kind: output, shape index: {}]
  %s3 = sld [smem:[#allocation0]]
  $region26: #{humf_forward_device.1} parent=0
    _
  %s5 = ssub.s32 1, %s3
  %s6 = scalar_select 0, %s5, %s3
  // Predicated region
  $region2: #{humf_forward_device.1} parent=0 // pred_check
    _
  $region3: #{humf_forward_device.1} parent=0 // pred_check_branch
    %8 = sbr.rel (0) target = $region5
  $region4: #{humf_forward_device.1} parent=0 // pred_region
    _
  $region5: #{humf_forward_device.1} parent=0 // pred_fallthru
    _
  // Predicated region
  $region6: #{humf_forward_device.1} parent=0 // pred_check
    _
  $region7: #{humf_forward_device.1} parent=0 // pred_check_branch
    %10 = sbr.rel (0) target = $region9
  $region8: #{humf_forward_device.1} parent=0 // pred_region
    _
  $region9: #{humf_forward_device.1} parent=0 // pred_fallthru
    _
  %p11 = scmp.eq.s32.totalorder 0, 0
  // Predicated region
  $region10: #{humf_forward_device.1} parent=0 // pred_check
    %p12 = pneg %p11
  $region11: #{humf_forward_device.1} parent=0 // pred_check_branch
    %14 = sbr.rel (%p12) target = $region13
  $region12: #{humf_forward_device.1} parent=0 // pred_region
    %15 = vst [vmem:[#allocation2] sm:$0x1] 0.0
  $region13: #{humf_forward_device.1} parent=0 // pred_fallthru
    _
  %v16 = vld [vmem:[%s0] sm:$0xff]
  %v17 = vld [vmem:[%s0 + $0x8] sm:$0xff]
  %v18 = vld [vmem:[%s0 + $0x10] sm:$0xff]
  %v19 = vld [vmem:[%s0 + $0x18] sm:$0xff]
  %v20 = vld [vmem:[%s0 + $0x20] sm:$0xff]
  %v21 = vld [vmem:[%s0 + $0x28] sm:$0xff]
  %v22 = vld [vmem:[%s0 + $0x30] sm:$0xff]
  %v23 = vld [vmem:[%s0 + $0x38] sm:$0xff]
  %v28 = vrot.slane %v16, 3
  %v29 = vrot.slane %v17, 3
  %v30 = vrot.slane %v18, 3
  %v31 = vrot.slane %v19, 3
  %v36 = vsub.f32 %v16, %v28
  %v37 = vsub.f32 %v17, %v29
  %v38 = vsub.f32 %v18, %v30
  %v39 = vsub.f32 %v19, %v31
  %v40 = vmul.f32 %v36, %v36
  %v41 = vmul.f32 %v37, %v37
  %v42 = vmul.f32 %v38, %v38
  %v43 = vmul.f32 %v39, %v39
  %vm44 = vcmask 1042432
  %v45 = vsel %vm44, %v40, 0.0
  %v46 = vrot.slane %v45, 4
  %v47 = vadd.f32 %v45, %v46
  %v48 = vrot.slane %v47, 2
  %v49 = vadd.f32 %v47, %v48
  %v50 = vrot.slane %v49, 1
  %v51 = vadd.f32 %v49, %v50
  %v52 = vsel %vm44, %v41, 0.0
  %v53 = vrot.slane %v52, 4
  %v54 = vadd.f32 %v52, %v53
  %v55 = vrot.slane %v54, 2
  %v56 = vadd.f32 %v54, %v55
  %v57 = vrot.slane %v56, 1
  %v58 = vadd.f32 %v56, %v57
  %v59 = vsel %vm44, %v42, 0.0
  %v60 = vrot.slane %v59, 4
  %v61 = vadd.f32 %v59, %v60
  %v62 = vrot.slane %v61, 2
  %v63 = vadd.f32 %v61, %v62
  %v64 = vrot.slane %v63, 1
  %v65 = vadd.f32 %v63, %v64
  %v66 = vsel %vm44, %v43, 0.0
  %v67 = vrot.slane %v66, 4
  %v68 = vadd.f32 %v66, %v67
  %v69 = vrot.slane %v68, 2
  %v70 = vadd.f32 %v68, %v69
  %v71 = vrot.slane %v70, 1
  %v72 = vadd.f32 %v70, %v71
  %vm73 = vcmp.gt.f32.partialorder %v51, 0.0
  %vm74 = vcmp.gt.f32.partialorder %v58, 0.0
  %vm75 = vcmp.gt.f32.partialorder %v65, 0.0
  %vm76 = vcmp.gt.f32.partialorder %v72, 0.0
  %v77 = vrsqrt.pop %v51
  %v78 = vrsqrt.pop %v58
  %v79 = vrsqrt.pop %v65
  %v80 = vrsqrt.pop %v72
  %v81 = vsel %vm73, %v77, 0.0
  %v82 = vsel %vm74, %v78, 0.0
  %v83 = vsel %vm75, %v79, 0.0
  %v84 = vsel %vm76, %v80, 0.0
  %v85 = vmul.f32 %v16, 332.06372
  %v86 = vmul.f32 %v17, 332.06372
  %v87 = vmul.f32 %v18, 332.06372
  %v88 = vmul.f32 %v19, 332.06372
  %v89 = vrot.slane %v16, 1
  %v90 = vrot.slane %v17, 1
  %v91 = vrot.slane %v18, 1
  %v92 = vrot.slane %v19, 1
  %v97 = vmul.f32 %v85, %v89
  %v98 = vmul.f32 %v86, %v90
  %v99 = vmul.f32 %v87, %v91
  %v100 = vmul.f32 %v88, %v92
  %v101 = vmul.f32 %v97, %v81
  %v102 = vmul.f32 %v98, %v82
  %v103 = vmul.f32 %v99, %v83
  %v104 = vmul.f32 %v100, %v84
  %v109 = vrot.slane %v20, 1
  %v110 = vrot.slane %v21, 1
  %v111 = vrot.slane %v22, 1
  %v112 = vrot.slane %v23, 1
  %v117 = vmul.f32 %v20, %v109
  %v118 = vmul.f32 %v21, %v110
  %v119 = vmul.f32 %v22, %v111
  %v120 = vmul.f32 %v23, %v112
  %v121 = vadd.f32 %v20, %v109
  %v122 = vadd.f32 %v21, %v110
  %v123 = vadd.f32 %v22, %v111
  %v124 = vadd.f32 %v23, %v112
  %v125 = vmul.f32 %v121, 0.5
  %v126 = vmul.f32 %v122, 0.5
  %v127 = vmul.f32 %v123, 0.5
  %v128 = vmul.f32 %v124, 0.5
  %v129 = vmul.f32 %v125, %v81
  %v130 = vmul.f32 %v126, %v82
  %v131 = vmul.f32 %v127, %v83
  %v132 = vmul.f32 %v128, %v84
  %v133 = vmul.f32 %v129, %v129
  %v134 = vmul.f32 %v130, %v130
  %v135 = vmul.f32 %v131, %v131
  %v136 = vmul.f32 %v132, %v132
  %v137 = vmul.f32 %v133, %v133
  %v138 = vmul.f32 %v134, %v134
  %v139 = vmul.f32 %v135, %v135
  %v140 = vmul.f32 %v136, %v136
  %v141 = vmul.f32 %v137, %v133
  %v142 = vmul.f32 %v138, %v134
  %v143 = vmul.f32 %v139, %v135
  %v144 = vmul.f32 %v140, %v136
  %v145 = vmul.f32 %v117, 4.0
  %v146 = vmul.f32 %v118, 4.0
  %v147 = vmul.f32 %v119, 4.0
  %v148 = vmul.f32 %v120, 4.0
  %v149 = vmul.f32 %v141, %v141
  %v150 = vmul.f32 %v142, %v142
  %v151 = vmul.f32 %v143, %v143
  %v152 = vmul.f32 %v144, %v144
  %v153 = vsub.f32 %v149, %v141
  %v154 = vsub.f32 %v150, %v142
  %v155 = vsub.f32 %v151, %v143
  %v156 = vsub.f32 %v152, %v144
  %v161 = vrot.slane %v153, 6
  %v162 = vrot.slane %v154, 6
  %v163 = vrot.slane %v155, 6
  %v164 = vrot.slane %v156, 6
  %v169 = vmul.f32 %v145, %v161
  %v170 = vmul.f32 %v146, %v162
  %v171 = vmul.f32 %v147, %v163
  %v172 = vmul.f32 %v148, %v164
  %v177 = vrot.slane %v169, 4
  %v178 = vrot.slane %v170, 4
  %v179 = vrot.slane %v171, 4
  %v180 = vrot.slane %v172, 4
  %v185 = vadd.f32 %v101, %v177
  %v186 = vadd.f32 %v102, %v178
  %v187 = vadd.f32 %v103, %v179
  %v188 = vadd.f32 %v104, %v180
  %v189 = vld [vmem:[#allocation2] sm:$0x1]
  %v190 = vld [vmem:[%s1] sm:$0xff]
  %v191 = vld [vmem:[%s1 + $0x8] sm:$0xff]
  %v192 = vld [vmem:[%s1 + $0x10] sm:$0xff]
  %v193 = vld [vmem:[%s1 + $0x18] sm:$0xff]
  %v194 = vld [vmem:[%s1 + $0x20] sm:$0xff]
  %v195 = vld [vmem:[%s1 + $0x28] sm:$0xff]
  %v196 = vld [vmem:[%s1 + $0x30] sm:$0xff]
  %v197 = vld [vmem:[%s1 + $0x38] sm:$0xff]
  %v198 = vld [vmem:[%s1 + $0x40] sm:$0xff]
  %v199 = vld [vmem:[%s1 + $0x48] sm:$0xff]
  %v200 = vld [vmem:[%s1 + $0x50] sm:$0xff]
  %v201 = vld [vmem:[%s1 + $0x58] sm:$0xff]
  %v202 = vld [vmem:[%s1 + $0x60] sm:$0xff]
  %v203 = vld [vmem:[%s1 + $0x68] sm:$0xff]
  %v204 = vld [vmem:[%s1 + $0x70] sm:$0xff]
  %v205 = vld [vmem:[%s1 + $0x78] sm:$0xff]
  %v206 = vld [vmem:[%s1 + $0x80] sm:$0xff]
  %v207 = vld [vmem:[%s1 + $0x88] sm:$0xff]
  %v208 = vld [vmem:[%s1 + $0x90] sm:$0xff]
  %v209 = vld [vmem:[%s1 + $0x98] sm:$0xff]
  %v210 = vld [vmem:[%s1 + $0xa0] sm:$0xff]
  %v211 = vld [vmem:[%s1 + $0xa8] sm:$0xff]
  %v212 = vld [vmem:[%s1 + $0xb0] sm:$0xff]
  %v213 = vld [vmem:[%s1 + $0xb8] sm:$0xff]
  %v214 = vld [vmem:[%s1 + $0xc0] sm:$0xff]
  %v215 = vld [vmem:[%s1 + $0xc8] sm:$0xff]
  %v216 = vld [vmem:[%s1 + $0xd0] sm:$0xff]
  %v217 = vld [vmem:[%s1 + $0xd8] sm:$0xff]
  %v218 = vld [vmem:[%s1 + $0xe0] sm:$0xff]
  %v219 = vld [vmem:[%s1 + $0xe8] sm:$0xff]
  %v220 = vld [vmem:[%s1 + $0xf0] sm:$0xff]
  %v221 = vld [vmem:[%s1 + $0xf8] sm:$0xff]
  %v222 = vld [vmem:[%s1 + $0x100] sm:$0xff]
  %v223 = vld [vmem:[%s1 + $0x108] sm:$0xff]
  %v224 = vld [vmem:[%s1 + $0x110] sm:$0xff]
  %v225 = vld [vmem:[%s1 + $0x118] sm:$0xff]
  %v226 = vld [vmem:[%s1 + $0x120] sm:$0xff]
  %v227 = vld [vmem:[%s1 + $0x128] sm:$0xff]
  %v228 = vld [vmem:[%s1 + $0x130] sm:$0xff]
  %v229 = vld [vmem:[%s1 + $0x138] sm:$0xff]
  %v230 = vld [vmem:[%s1 + $0x140] sm:$0xff]
  %v231 = vld [vmem:[%s1 + $0x148] sm:$0xff]
  %v232 = vld [vmem:[%s1 + $0x150] sm:$0xff]
  %v233 = vld [vmem:[%s1 + $0x158] sm:$0xff]
  %v234 = vld [vmem:[%s1 + $0x160] sm:$0xff]
  %v235 = vld [vmem:[%s1 + $0x168] sm:$0xff]
  %v236 = vld [vmem:[%s1 + $0x170] sm:$0xff]
  %v237 = vld [vmem:[%s1 + $0x178] sm:$0xff]
  %v238 = vld [vmem:[%s1 + $0x180] sm:$0xff]
  %v239 = vld [vmem:[%s1 + $0x188] sm:$0xff]
  %v240 = vld [vmem:[%s1 + $0x190] sm:$0xff]
  %v241 = vld [vmem:[%s1 + $0x198] sm:$0xff]
  %v242 = vld [vmem:[%s1 + $0x1a0] sm:$0xff]
  %v243 = vld [vmem:[%s1 + $0x1a8] sm:$0xff]
  %v244 = vld [vmem:[%s1 + $0x1b0] sm:$0xff]
  %v245 = vld [vmem:[%s1 + $0x1b8] sm:$0xff]
  %v246 = vld [vmem:[%s1 + $0x1c0] sm:$0xff]
  %v247 = vld [vmem:[%s1 + $0x1c8] sm:$0xff]
  %v248 = vld [vmem:[%s1 + $0x1d0] sm:$0xff]
  %v249 = vld [vmem:[%s1 + $0x1d8] sm:$0xff]
  %v250 = vld [vmem:[%s1 + $0x1e0] sm:$0xff]
  %v251 = vld [vmem:[%s1 + $0x1e8] sm:$0xff]
  %v252 = vld [vmem:[%s1 + $0x1f0] sm:$0xff]
  %v253 = vld [vmem:[%s1 + $0x1f8] sm:$0xff]
  %v258 = vrot.slane %v185, 6
  %v259 = vrot.slane %v186, 6
  %v260 = vrot.slane %v187, 6
  %v261 = vrot.slane %v188, 6
  %266 = vmatprep.subr.mxu0 0.0
  %267 = vmatpush1.msra.mxu0 %v190
  %268 = vmatprep.subr.mxu0 0.0
  %269 = vmatpush1.msra.mxu0 %v191
  %270 = vmatprep.subr.mxu0 0.0
  %271 = vmatpush1.msra.mxu0 %v192
  %272 = vmatprep.subr.mxu0 0.0
  %273 = vmatpush1.msra.mxu0 %v193
  %274 = vmatprep.subr.mxu0 0.0
  %275 = vmatpush1.msra.mxu0 %v194
  %276 = vmatprep.subr.mxu0 0.0
  %277 = vmatpush1.msra.mxu0 %v195
  %278 = vmatprep.subr.mxu0 0.0
  %279 = vmatpush1.msra.mxu0 %v196
  %280 = vmatprep.subr.mxu0 0.0
  %281 = vmatpush1.msra.mxu0 %v197
  %282 = vmatprep.subr.mxu0 0.0
  %283 = vmatpush1.msra.mxu0 %v198
  %284 = vmatprep.subr.mxu0 0.0
  %285 = vmatpush1.msra.mxu0 %v199
  %286 = vmatprep.subr.mxu0 0.0
  %287 = vmatpush1.msra.mxu0 %v200
  %288 = vmatprep.subr.mxu0 0.0
  %289 = vmatpush1.msra.mxu0 %v201
  %290 = vmatprep.subr.mxu0 0.0
  %291 = vmatpush1.msra.mxu0 %v202
  %292 = vmatprep.subr.mxu0 0.0
  %293 = vmatpush1.msra.mxu0 %v203
  %294 = vmatprep.subr.mxu0 0.0
  %295 = vmatpush1.msra.mxu0 %v204
  %296 = vmatprep.subr.mxu0 0.0
  %297 = vmatpush1.msra.mxu0 %v205
  %298 = vmatprep.subr.mxu0 0.0
  %299 = vmatpush1.msra.mxu0 %v206
  %300 = vmatprep.subr.mxu0 0.0
  %301 = vmatpush1.msra.mxu0 %v207
  %302 = vmatprep.subr.mxu0 0.0
  %303 = vmatpush1.msra.mxu0 %v208
  %304 = vmatprep.subr.mxu0 0.0
  %305 = vmatpush1.msra.mxu0 %v209
  %306 = vmatprep.subr.mxu0 0.0
  %307 = vmatpush1.msra.mxu0 %v210
  %308 = vmatprep.subr.mxu0 0.0
  %309 = vmatpush1.msra.mxu0 %v211
  %310 = vmatprep.subr.mxu0 0.0
  %311 = vmatpush1.msra.mxu0 %v212
  %312 = vmatprep.subr.mxu0 0.0
  %313 = vmatpush1.msra.mxu0 %v213
  %314 = vmatprep.subr.mxu0 0.0
  %315 = vmatpush1.msra.mxu0 %v214
  %316 = vmatprep.subr.mxu0 0.0
  %317 = vmatpush1.msra.mxu0 %v215
  %318 = vmatprep.subr.mxu0 0.0
  %319 = vmatpush1.msra.mxu0 %v216
  %320 = vmatprep.subr.mxu0 0.0
  %321 = vmatpush1.msra.mxu0 %v217
  %322 = vmatprep.subr.mxu0 0.0
  %323 = vmatpush1.msra.mxu0 %v218
  %324 = vmatprep.subr.mxu0 0.0
  %325 = vmatpush1.msra.mxu0 %v219
  %326 = vmatprep.subr.mxu0 0.0
  %327 = vmatpush1.msra.mxu0 %v220
  %328 = vmatprep.subr.mxu0 0.0
  %329 = vmatpush1.msra.mxu0 %v221
  %330 = vmatprep.mubr.f32.mxu0 %v259
  %331 = vmatmul.mubr.f32.gmra.mrb[0].mxu0 %v258
  %v332 = vpop.f32.mrb[0].mxu0
  %v333 = vadd.f32 0.0, %v332
  %v334 = vpop.f32.mrb[0].mxu0
  %335 = vdwg.mxu0
  %336 = vmatprep.subr.mxu0 0.0
  %337 = vmatpush1.msra.mxu0 %v222
  %338 = vmatprep.subr.mxu0 0.0
  %339 = vmatpush1.msra.mxu0 %v223
  %340 = vmatprep.subr.mxu0 0.0
  %341 = vmatpush1.msra.mxu0 %v224
  %342 = vmatprep.subr.mxu0 0.0
  %343 = vmatpush1.msra.mxu0 %v225
  %344 = vmatprep.subr.mxu0 0.0
  %345 = vmatpush1.msra.mxu0 %v226
  %346 = vmatprep.subr.mxu0 0.0
  %347 = vmatpush1.msra.mxu0 %v227
  %348 = vmatprep.subr.mxu0 0.0
  %349 = vmatpush1.msra.mxu0 %v228
  %350 = vmatprep.subr.mxu0 0.0
  %351 = vmatpush1.msra.mxu0 %v229
  %352 = vmatprep.subr.mxu0 0.0
  %353 = vmatpush1.msra.mxu0 %v230
  %354 = vmatprep.subr.mxu0 0.0
  %355 = vmatpush1.msra.mxu0 %v231
  %356 = vmatprep.subr.mxu0 0.0
  %357 = vmatpush1.msra.mxu0 %v232
  %358 = vmatprep.subr.mxu0 0.0
  %359 = vmatpush1.msra.mxu0 %v233
  %360 = vmatprep.subr.mxu0 0.0
  %361 = vmatpush1.msra.mxu0 %v234
  %362 = vmatprep.subr.mxu0 0.0
  %363 = vmatpush1.msra.mxu0 %v235
  %364 = vmatprep.subr.mxu0 0.0
  %365 = vmatpush1.msra.mxu0 %v236
  %366 = vmatprep.subr.mxu0 0.0
  %367 = vmatpush1.msra.mxu0 %v237
  %368 = vmatprep.subr.mxu0 0.0
  %369 = vmatpush1.msra.mxu0 %v238
  %370 = vmatprep.subr.mxu0 0.0
  %371 = vmatpush1.msra.mxu0 %v239
  %372 = vmatprep.subr.mxu0 0.0
  %373 = vmatpush1.msra.mxu0 %v240
  %374 = vmatprep.subr.mxu0 0.0
  %375 = vmatpush1.msra.mxu0 %v241
  %376 = vmatprep.subr.mxu0 0.0
  %377 = vmatpush1.msra.mxu0 %v242
  %378 = vmatprep.subr.mxu0 0.0
  %379 = vmatpush1.msra.mxu0 %v243
  %380 = vmatprep.subr.mxu0 0.0
  %381 = vmatpush1.msra.mxu0 %v244
  %382 = vmatprep.subr.mxu0 0.0
  %383 = vmatpush1.msra.mxu0 %v245
  %384 = vmatprep.subr.mxu0 0.0
  %385 = vmatpush1.msra.mxu0 %v246
  %386 = vmatprep.subr.mxu0 0.0
  %387 = vmatpush1.msra.mxu0 %v247
  %388 = vmatprep.subr.mxu0 0.0
  %389 = vmatpush1.msra.mxu0 %v248
  %390 = vmatprep.subr.mxu0 0.0
  %391 = vmatpush1.msra.mxu0 %v249
  %392 = vmatprep.subr.mxu0 0.0
  %393 = vmatpush1.msra.mxu0 %v250
  %394 = vmatprep.subr.mxu0 0.0
  %395 = vmatpush1.msra.mxu0 %v251
  %396 = vmatprep.subr.mxu0 0.0
  %397 = vmatpush1.msra.mxu0 %v252
  %398 = vmatprep.subr.mxu0 0.0
  %399 = vmatpush1.msra.mxu0 %v253
  %400 = vmatprep.mubr.f32.mxu0 %v261
  %401 = vmatmul.mubr.f32.gmra.mrb[0].mxu0 %v260
  %v402 = vpop.f32.mrb[0].mxu0
  %v403 = vadd.f32 %v333, %v402
  %v404 = vpop.f32.mrb[0].mxu0
  %405 = vdwg.mxu0
  %v406 = vadd.f32 %v189, %v403
  %407 = vst [vmem:[#allocation2] sm:$0x1] %v406
  // Predicated region
  $region14: #{humf_forward_device.1} parent=0 // pred_check
    %p408 = pneg %p11
  $region15: #{humf_forward_device.1} parent=0 // pred_check_branch
    %410 = sbr.rel (%p408) target = $region17
  $region16: #{humf_forward_device.1} parent=0 // pred_region
    %v411 = vld [vmem:[#allocation2] sm:$0x1]
    %412 = vst [vmem:[%s2] sm:$0x1] %v411
  $region17: #{humf_forward_device.1} parent=0 // pred_fallthru
    _
  // Predicated region
  $region18: #{humf_forward_device.1} parent=0 // pred_check
    _
  $region19: #{humf_forward_device.1} parent=0 // pred_check_branch
    %414 = sbr.rel (0) target = $region21
  $region20: #{humf_forward_device.1} parent=0 // pred_region
    _
  $region21: #{humf_forward_device.1} parent=0 // pred_fallthru
    _
  // Predicated region
  $region22: #{humf_forward_device.1} parent=0 // pred_check
    _
  $region23: #{humf_forward_device.1} parent=0 // pred_check_branch
    %416 = sbr.rel (0) target = $region25
  $region24: #{humf_forward_device.1} parent=0 // pred_region
    _
  $region25: #{humf_forward_device.1} parent=0 // pred_fallthru
    _

</llo_original>
